<compile_context>
chip_gen: v7x
topology: tpu7x:2x2x1
jax: 0.10.0
libtpu: 0.0.40
codegen_flags: <defaults>
</compile_context>

<pallas_src>
import jax
import jax.numpy as jnp
from jax.experimental import pallas as pl
from jax.experimental.pallas import tpu as pltpu

# Slab row offsets — every param starts on an 8-row (sublane-tile) boundary.
_W1_ROW, _B1_ROW = 0, 8      # w1 (8,6),  b1 (1,6)
_W2_ROW, _B2_ROW = 16, 24    # w2 (6,4),  b2 (1,4)
_W3_ROW, _B3_ROW = 32, 40    # w3 (4,1),  b3 (1,1)   (stored 128-lane padded)
_SLAB_ROWS = 48
_LANES = 128


def mlp_kernel(x_ref, p_ref, o_ref):
    # One batch tile per grid step; the three matmuls run back-to-back so the MXU
    # pushes of layers 2/3 hide under layer 1's result pop.
    x = x_ref[...]                                    # (TB, 8) f32 — no cast needed

    w1 = p_ref[_W1_ROW:_W1_ROW + 8, 0:6]              # (8, 6)
    b1 = p_ref[_B1_ROW:_B1_ROW + 1, 0:6]              # (1, 6)
    w2 = p_ref[_W2_ROW:_W2_ROW + 6, 0:4]              # (6, 4)
    b2 = p_ref[_B2_ROW:_B2_ROW + 1, 0:4]              # (1, 4)
    # Final layer kept full 128 lanes wide (cols >= 1 are zero) so the output
    # store is an unmasked, lane-dense vst instead of a masked 1-lane store.
    w3 = p_ref[_W3_ROW:_W3_ROW + 4, :]                # (4, 128)
    b3 = p_ref[_B3_ROW:_B3_ROW + 1, :]                # (1, 128)

    # jax.nn.sigmoid -> stable logistic on the EUP slot (no VALU divide sequence).
    h1 = jax.nn.sigmoid(jnp.dot(x, w1, preferred_element_type=jnp.float32) + b1)
    h2 = jax.nn.sigmoid(jnp.dot(h1, w2, preferred_element_type=jnp.float32) + b2)
    h3 = jax.nn.sigmoid(jnp.dot(h2, w3, preferred_element_type=jnp.float32) + b3)

    o_ref[...] = h3                                   # (TB, 128); column 0 is y_pred


def pack_params(w1, b1, w2, b2, w3, b3):
    """Concatenate all params into one (48, 128) f32 slab (zero padded)."""
    slab = jnp.zeros((_SLAB_ROWS, _LANES), jnp.float32)

    def place(s, arr, row0):
        r, c = arr.shape
        return s.at[row0:row0 + r, 0:c].set(arr.astype(jnp.float32))

    slab = place(slab, w1, _W1_ROW)
    slab = place(slab, b1, _B1_ROW)
    slab = place(slab, w2, _W2_ROW)
    slab = place(slab, b2, _B2_ROW)
    slab = place(slab, w3, _W3_ROW)
    slab = place(slab, b3, _B3_ROW)
    return slab


def mlp_forward(x, packed_params, *, tb=None):
    B = x.shape[0]
    if tb is None:
        # Batch tile: whole (8-padded) batch for tiny B, 512 rows for large B.
        # Per-step VMEM footprint stays < 1 MiB even double-buffered, well inside
        # the v7x 64 MiB / 32 MiB-scoped budget.
        tb = min(512, ((B + 7) // 8) * 8)
    b_pad = ((B + tb - 1) // tb) * tb
    if b_pad != B:
        x = jnp.pad(x, ((0, b_pad - B), (0, 0)))

    out = pl.pallas_call(
        mlp_kernel,
        out_shape=jax.ShapeDtypeStruct((b_pad, _LANES), jnp.float32),
        grid_spec=pltpu.PrefetchScalarGridSpec(
            num_scalar_prefetch=0,
            grid=(b_pad // tb,),
            in_specs=[
                pl.BlockSpec((tb, 8), lambda i: (i, 0)),          # batch tile of x
                pl.BlockSpec((_SLAB_ROWS, _LANES), lambda i: (0, 0)),  # weights stay resident
            ],
            out_specs=pl.BlockSpec((tb, _LANES), lambda i: (i, 0)),
        ),
        compiler_params=pltpu.CompilerParams(
            dimension_semantics=("parallel",),       # shard batch tiles across TCs (v7x)
        ),
    )(x, packed_params)
    return out[:B, :1]


def init_linear(key, fan_in, fan_out):
    # Deterministic init mimicking torch.nn.Linear default (uniform +-1/sqrt(fan_in)).
    k_w, k_b = jax.random.split(key)
    bound = 1.0 / jnp.sqrt(float(fan_in))
    w = jax.random.uniform(k_w, (fan_in, fan_out), jnp.float32, -bound, bound)
    b = jax.random.uniform(k_b, (1, fan_out), jnp.float32, -bound, bound)
    return w, b


def reference_forward(x, params):
    w1, b1, w2, b2, w3, b3 = params
    h1 = jax.nn.sigmoid(x @ w1 + b1)
    h2 = jax.nn.sigmoid(h1 @ w2 + b2)
    return jax.nn.sigmoid(h2 @ w3 + b3)


if __name__ == "__main__":
    key = jax.random.PRNGKey(0)
    k_x, k1, k2, k3 = jax.random.split(key, 4)

    B = 8
    x = jax.random.normal(k_x, (B, 8), jnp.float32)

    w1, b1 = init_linear(k1, 8, 6)
    w2, b2 = init_linear(k2, 6, 4)
    w3, b3 = init_linear(k3, 4, 1)
    params = (w1, b1, w2, b2, w3, b3)

    slab = pack_params(*params)
    out = mlp_forward(x, slab)
    jax.block_until_ready(out)

    ref = reference_forward(x, params)
    assert out.shape == (B, 1)
    assert jnp.allclose(out, ref, atol=1e-5, rtol=1e-5)
    print("KERNEL_OK")
</pallas_src>

<mosaic_0001>
module attributes {stable_mosaic.version = 11 : i64} {
  func.func @mlp_kernel(%arg0: i32, %arg1: memref<8x8xf32, #tpu.memory_space<vmem>>, %arg2: memref<48x128xf32, #tpu.memory_space<vmem>>, %arg3: memref<8x128xf32, #tpu.memory_space<vmem>>) attributes {dimension_semantics = [#tpu.dimension_semantics<parallel>], iteration_bounds = array<i64: 1>, scalar_prefetch = 0 : i64, scratch_operands = 0 : i64, tpu.core_type = #tpu.core_type<tc>, window_params = [{transform_indices = @transform_0, window_bounds = array<i64: 8, 8>}, {pipeline_mode = #tpu.pipeline_mode<synchronous>, transform_indices = @transform_1, window_bounds = array<i64: 48, 128>}, {transform_indices = @transform_2, window_bounds = array<i64: 8, 128>}]} {
    %c0 = arith.constant 0 : index
    %c0_0 = arith.constant 0 : index
    %0 = vector.load %arg1[%c0, %c0_0] : memref<8x8xf32, #tpu.memory_space<vmem>>, vector<8x8xf32>
    %c0_1 = arith.constant 0 : index
    %c0_2 = arith.constant 0 : index
    %1 = vector.load %arg2[%c0_1, %c0_2] : memref<48x128xf32, #tpu.memory_space<vmem>>, vector<8x6xf32>
    %c8 = arith.constant 8 : index
    %c0_3 = arith.constant 0 : index
    %2 = vector.load %arg2[%c8, %c0_3] : memref<48x128xf32, #tpu.memory_space<vmem>>, vector<1x6xf32>
    %c16 = arith.constant 16 : index
    %c0_4 = arith.constant 0 : index
    %3 = vector.load %arg2[%c16, %c0_4] : memref<48x128xf32, #tpu.memory_space<vmem>>, vector<6x4xf32>
    %c24 = arith.constant 24 : index
    %c0_5 = arith.constant 0 : index
    %4 = vector.load %arg2[%c24, %c0_5] : memref<48x128xf32, #tpu.memory_space<vmem>>, vector<1x4xf32>
    %c32 = arith.constant 32 : index
    %c0_6 = arith.constant 0 : index
    %5 = vector.load %arg2[%c32, %c0_6] : memref<48x128xf32, #tpu.memory_space<vmem>>, vector<4x128xf32>
    %c40 = arith.constant 40 : index
    %c0_7 = arith.constant 0 : index
    %6 = vector.load %arg2[%c40, %c0_7] : memref<48x128xf32, #tpu.memory_space<vmem>>, vector<1x128xf32>
    %cst = arith.constant dense<0.000000e+00> : vector<8x6xf32>
    %7 = tpu.matmul %0, %1, %cst {dimension_numbers = #tpu.dot_dimension_numbers<[1], [0], [0], [1], [0, 0, 1, 1], [], []>} : vector<8x8xf32>, vector<8x6xf32>, vector<8x6xf32> -> vector<8x6xf32>
    %8 = vector.broadcast %2 : vector<1x6xf32> to vector<8x6xf32>
    %9 = arith.addf %7, %8 : vector<8x6xf32>
    %10 = arith.negf %9 : vector<8x6xf32>
    %11 = math.exp %10 : vector<8x6xf32>
    %cst_8 = arith.constant 1.000000e+00 : f32
    %12 = vector.broadcast %cst_8 : f32 to vector<8x6xf32>
    %13 = arith.addf %12, %11 : vector<8x6xf32>
    %14 = arith.divf %12, %13 : vector<8x6xf32>
    %cst_9 = arith.constant dense<0.000000e+00> : vector<8x4xf32>
    %15 = tpu.matmul %14, %3, %cst_9 {dimension_numbers = #tpu.dot_dimension_numbers<[1], [0], [0], [1], [0, 0, 1, 1], [], []>} : vector<8x6xf32>, vector<6x4xf32>, vector<8x4xf32> -> vector<8x4xf32>
    %16 = vector.broadcast %4 : vector<1x4xf32> to vector<8x4xf32>
    %17 = arith.addf %15, %16 : vector<8x4xf32>
    %18 = arith.negf %17 : vector<8x4xf32>
    %19 = math.exp %18 : vector<8x4xf32>
    %cst_10 = arith.constant 1.000000e+00 : f32
    %20 = vector.broadcast %cst_10 : f32 to vector<8x4xf32>
    %21 = arith.addf %20, %19 : vector<8x4xf32>
    %22 = arith.divf %20, %21 : vector<8x4xf32>
    %cst_11 = arith.constant dense<0.000000e+00> : vector<8x128xf32>
    %23 = tpu.matmul %22, %5, %cst_11 {dimension_numbers = #tpu.dot_dimension_numbers<[1], [0], [0], [1], [0, 0, 1, 1], [], []>} : vector<8x4xf32>, vector<4x128xf32>, vector<8x128xf32> -> vector<8x128xf32>
    %24 = vector.broadcast %6 : vector<1x128xf32> to vector<8x128xf32>
    %25 = arith.addf %23, %24 : vector<8x128xf32>
    %26 = arith.negf %25 : vector<8x128xf32>
    %27 = math.exp %26 : vector<8x128xf32>
    %cst_12 = arith.constant 1.000000e+00 : f32
    %28 = vector.broadcast %cst_12 : f32 to vector<8x128xf32>
    %29 = arith.addf %28, %27 : vector<8x128xf32>
    %30 = arith.divf %28, %29 : vector<8x128xf32>
    %c0_13 = arith.constant 0 : index
    %c0_14 = arith.constant 0 : index
    %31 = vector.load %arg3[%c0_13, %c0_14] : memref<8x128xf32, #tpu.memory_space<vmem>>, vector<8x128xf32>
    tpu.vector_store %arg3[%c0_13, %c0_14], %30 {strides = array<i32>} : memref<8x128xf32, #tpu.memory_space<vmem>>, vector<8x128xf32>,
    return
  }
  func.func @transform_0(%arg0: i32) -> (i32, i32) {
    %c0_i32 = arith.constant 0 : i32
    %c0_i32_0 = arith.constant 0 : i32
    return %arg0, %c0_i32 : i32, i32
  }
  func.func @transform_1(%arg0: i32) -> (i32, i32) {
    %c0_i32 = arith.constant 0 : i32
    %c0_i32_0 = arith.constant 0 : i32
    %c0_i32_1 = arith.constant 0 : i32
    return %c0_i32, %c0_i32_0 : i32, i32
  }
  func.func @transform_2(%arg0: i32) -> (i32, i32) {
    %c0_i32 = arith.constant 0 : i32
    %c0_i32_0 = arith.constant 0 : i32
    return %arg0, %c0_i32 : i32, i32
  }
}

</mosaic_0001>

<llo_original>
// kernel: tpu_custom_call.1
$region0: #{tpu_custom_call.1}
  #allocation0 [shape = 'u32[]', space=smem, size = 0x4, offset = 0x4, fixed_abs, tag = 'smem constant byte address 0x4 - core index']
  #allocation1 [shape = 'u32[144,128]{1,0:T(1,128)}', space=vmem, size = 0x12000, scoped, tag = 'internal scratch']
  %s0 = inlined_call_operand.hbm [shape: f32[8,8], index: 0, kind: input, shape index: {}]
  %s1 = inlined_call_operand.hbm [shape: f32[48,128], index: 1, kind: input, shape index: {}]
  %s2 = inlined_call_operand.hbm [shape: f32[8,128], index: 2, kind: output, shape index: {}]
  %s3 = sld [smem:[#allocation0]]
  $region26: #{tpu_custom_call.1} parent=0
    _
  %s5 = ssub.s32 1, %s3
  %s6 = scalar_select 0, %s5, %s3
  $region1: #{tpu_custom_call.1} parent=0
    #allocation2 [shape = 'u8[4096]{0}', space=vmem, size = 0x1000, scoped, tag = 'input window, operand 0, single buffered']
    #allocation3 [shape = 's32[1]{0}', space=sflag, size = 0x4, scoped, tag = 'scoped memory for tpu_custom_call.1']
    #allocation4 [shape = 's32[1]{0}', space=sflag, size = 0x4, scoped, tag = 'scoped memory for tpu_custom_call.1']
    #allocation5 [shape = 'u8[24576]{0}', space=vmem, size = 0x6000, scoped, tag = 'input window, operand 1, single buffered']
    #allocation6 [shape = 's32[1]{0}', space=sflag, size = 0x4, scoped, tag = 'scoped memory for tpu_custom_call.1']
    #allocation7 [shape = 'u8[4096]{0}', space=vmem, size = 0x1000, scoped, tag = 'output window, operand 0, single buffered']
    %7 = vsyncpa [#allocation3], 0
    %8 = vsyncpa [#allocation6], 0
    %9 = vsyncpa [#allocation4], 0
    // Predicated region
    $region2: #{tpu_custom_call.1} parent=1 // pred_check
      _
    $region3: #{tpu_custom_call.1} parent=1 // pred_check_branch
      %11 = sbr.rel (0) target = $region5
    $region4: #{tpu_custom_call.1} parent=1 // pred_region
      %s13 = ssub.s32 128, 128
      %14 = vsyncadd [#allocation3], %s13
      %s16 = sshll.u32 [#allocation2], 4
      %s17 = int_to_ptr.vmem [resolvable:$true] %s16
      %19 = dma.hbm_to_vmem [thread:$0]  %s0, 128, %s17, [#allocation3]
    $region5: #{tpu_custom_call.1} parent=1 // pred_fallthru
      _
    // Predicated region
    $region6: #{tpu_custom_call.1} parent=1 // pred_check
      _
    $region7: #{tpu_custom_call.1} parent=1 // pred_check_branch
      %21 = sbr.rel (0) target = $region9
    $region8: #{tpu_custom_call.1} parent=1 // pred_region
      %s23 = ssub.s32 768, 768
      %24 = vsyncadd [#allocation6], %s23
      %s25 = sshll.u32 [#allocation5], 4
      %s26 = int_to_ptr.vmem [resolvable:$true] %s25
      %31 = dma.hbm_to_vmem [thread:$0]  %s1, 768, %s26, [#allocation6], 128, 128, 8
    $region9: #{tpu_custom_call.1} parent=1 // pred_fallthru
      _
    // Predicated region
    $region10: #{tpu_custom_call.1} parent=1 // pred_check
      _
    $region11: #{tpu_custom_call.1} parent=1 // pred_check_branch
      %33 = sbr.rel (0) target = $region13
    $region12: #{tpu_custom_call.1} parent=1 // pred_region
      %34 = dma.done [#allocation3], 128
    $region13: #{tpu_custom_call.1} parent=1 // pred_fallthru
      _
    // Predicated region
    $region14: #{tpu_custom_call.1} parent=1 // pred_check
      _
    $region15: #{tpu_custom_call.1} parent=1 // pred_check_branch
      %36 = sbr.rel (0) target = $region17
    $region16: #{tpu_custom_call.1} parent=1 // pred_region
      %37 = dma.done [#allocation6], 768
    $region17: #{tpu_custom_call.1} parent=1 // pred_fallthru
      _
    %v38 = vld [vmem:[#allocation2] sm:$0xff]
    %v39 = vld [vmem:[#allocation5] sm:$0xff]
    %v40 = vld [vmem:[#allocation5 + $0x8] sm:$0x1]
    %v41 = vld [vmem:[#allocation5 + $0x10] sm:$0x3f]
    %v42 = vld [vmem:[#allocation5 + $0x18] sm:$0x1]
    %v43 = vld [vmem:[#allocation5 + $0x20] sm:$0xf]
    %v44 = vld [vmem:[#allocation5 + $0x28] sm:$0x1]
    %v45 = vlaneseq
    %v46 = vshrl.u32 %v45, 7
    %v47 = vsub.s32 0, %v46
    %v48 = vrot.slane %v40, %v47
    %vm49 = vcmask 64512
    %v51 = vsel %vm49, %v38, 0
    %53 = vmatprep.subr.mxu0 0.0
    %54 = vmatpush1.msra.mxu0 %v39
    %55 = vmatprep.subr.mxu0 0.0
    %56 = vmatpush1.msra.mxu0 0.0
    %57 = vmatprep.subr.mxu0 0.0
    %58 = vmatpush1.msra.mxu0 0.0
    %59 = vmatprep.subr.mxu0 0.0
    %60 = vmatpush1.msra.mxu0 0.0
    %61 = vmatprep.subr.mxu0 0.0
    %62 = vmatpush1.msra.mxu0 0.0
    %63 = vmatprep.subr.mxu0 0.0
    %64 = vmatpush1.msra.mxu0 0.0
    %65 = vmatprep.subr.mxu0 0.0
    %66 = vmatpush1.msra.mxu0 0.0
    %67 = vmatprep.subr.mxu0 0.0
    %68 = vmatpush1.msra.mxu0 0.0
    %69 = vmatprep.subr.mxu0 0.0
    %70 = vmatpush1.msra.mxu0 0.0
    %71 = vmatprep.subr.mxu0 0.0
    %72 = vmatpush1.msra.mxu0 0.0
    %73 = vmatprep.subr.mxu0 0.0
    %74 = vmatpush1.msra.mxu0 0.0
    %75 = vmatprep.subr.mxu0 0.0
    %76 = vmatpush1.msra.mxu0 0.0
    %77 = vmatprep.subr.mxu0 0.0
    %78 = vmatpush1.msra.mxu0 0.0
    %79 = vmatprep.subr.mxu0 0.0
    %80 = vmatpush1.msra.mxu0 0.0
    %81 = vmatprep.subr.mxu0 0.0
    %82 = vmatpush1.msra.mxu0 0.0
    %83 = vmatprep.subr.mxu0 0.0
    %84 = vmatpush1.msra.mxu0 0.0
    %85 = vmatprep.subr.mxu0 0.0
    %86 = vmatpush1.msra.mxu0 0.0
    %87 = vmatprep.subr.mxu0 0.0
    %88 = vmatpush1.msra.mxu0 0.0
    %89 = vmatprep.subr.mxu0 0.0
    %90 = vmatpush1.msra.mxu0 0.0
    %91 = vmatprep.subr.mxu0 0.0
    %92 = vmatpush1.msra.mxu0 0.0
    %93 = vmatprep.subr.mxu0 0.0
    %94 = vmatpush1.msra.mxu0 0.0
    %95 = vmatprep.subr.mxu0 0.0
    %96 = vmatpush1.msra.mxu0 0.0
    %97 = vmatprep.subr.mxu0 0.0
    %98 = vmatpush1.msra.mxu0 0.0
    %99 = vmatprep.subr.mxu0 0.0
    %100 = vmatpush1.msra.mxu0 0.0
    %101 = vmatprep.subr.mxu0 0.0
    %102 = vmatpush1.msra.mxu0 0.0
    %103 = vmatprep.subr.mxu0 0.0
    %104 = vmatpush1.msra.mxu0 0.0
    %105 = vmatprep.subr.mxu0 0.0
    %106 = vmatpush1.msra.mxu0 0.0
    %107 = vmatprep.subr.mxu0 0.0
    %108 = vmatpush1.msra.mxu0 0.0
    %109 = vmatprep.subr.mxu0 0.0
    %110 = vmatpush1.msra.mxu0 0.0
    %111 = vmatprep.subr.mxu0 0.0
    %112 = vmatpush1.msra.mxu0 0.0
    %113 = vmatprep.subr.mxu0 0.0
    %114 = vmatpush1.msra.mxu0 0.0
    %115 = vmatprep.subr.mxu0 0.0
    %116 = vmatpush1.msra.mxu0 0.0
    %117 = vmatprep.mubr.f32.mxu0 0.0
    %118 = vmatmul.mubr.f32.gmra.mrb[0].mxu0 %v51
    %v119 = vpop.f32.mrb[0].mxu0
    %v120 = vadd.f32 %v48, %v119
    %v121 = vpop.f32.mrb[0].mxu0
    %122 = vdwg.mxu0
    %v123 = vxor.u32 %v120, 2147483648
    %v124 = vmul.f32 %v123, 1.442695
    %v125 = vpow.pop %v124
    %v126 = vadd.f32 %v125, 1.0
    %v127 = vrcp.pop %v126
    %v128 = vmul.f32 1.0, %v127
    %v129 = vlaneseq
    %v130 = vshrl.u32 %v129, 7
    %v131 = vsub.s32 0, %v130
    %v132 = vrot.slane %v42, %v131
    %vm133 = vcmask 48128
    %v135 = vsel %vm133, %v128, 0
    %vm137 = vcmask 1045504
    %v139 = vsel %vm137, %v41, 0
    %141 = vmatprep.subr.mxu0 0.0
    %142 = vmatpush1.msra.mxu0 %v139
    %143 = vmatprep.subr.mxu0 0.0
    %144 = vmatpush1.msra.mxu0 0.0
    %145 = vmatprep.subr.mxu0 0.0
    %146 = vmatpush1.msra.mxu0 0.0
    %147 = vmatprep.subr.mxu0 0.0
    %148 = vmatpush1.msra.mxu0 0.0
    %149 = vmatprep.subr.mxu0 0.0
    %150 = vmatpush1.msra.mxu0 0.0
    %151 = vmatprep.subr.mxu0 0.0
    %152 = vmatpush1.msra.mxu0 0.0
    %153 = vmatprep.subr.mxu0 0.0
    %154 = vmatpush1.msra.mxu0 0.0
    %155 = vmatprep.subr.mxu0 0.0
    %156 = vmatpush1.msra.mxu0 0.0
    %157 = vmatprep.subr.mxu0 0.0
    %158 = vmatpush1.msra.mxu0 0.0
    %159 = vmatprep.subr.mxu0 0.0
    %160 = vmatpush1.msra.mxu0 0.0
    %161 = vmatprep.subr.mxu0 0.0
    %162 = vmatpush1.msra.mxu0 0.0
    %163 = vmatprep.subr.mxu0 0.0
    %164 = vmatpush1.msra.mxu0 0.0
    %165 = vmatprep.subr.mxu0 0.0
    %166 = vmatpush1.msra.mxu0 0.0
    %167 = vmatprep.subr.mxu0 0.0
    %168 = vmatpush1.msra.mxu0 0.0
    %169 = vmatprep.subr.mxu0 0.0
    %170 = vmatpush1.msra.mxu0 0.0
    %171 = vmatprep.subr.mxu0 0.0
    %172 = vmatpush1.msra.mxu0 0.0
    %173 = vmatprep.subr.mxu0 0.0
    %174 = vmatpush1.msra.mxu0 0.0
    %175 = vmatprep.subr.mxu0 0.0
    %176 = vmatpush1.msra.mxu0 0.0
    %177 = vmatprep.subr.mxu0 0.0
    %178 = vmatpush1.msra.mxu0 0.0
    %179 = vmatprep.subr.mxu0 0.0
    %180 = vmatpush1.msra.mxu0 0.0
    %181 = vmatprep.subr.mxu0 0.0
    %182 = vmatpush1.msra.mxu0 0.0
    %183 = vmatprep.subr.mxu0 0.0
    %184 = vmatpush1.msra.mxu0 0.0
    %185 = vmatprep.subr.mxu0 0.0
    %186 = vmatpush1.msra.mxu0 0.0
    %187 = vmatprep.subr.mxu0 0.0
    %188 = vmatpush1.msra.mxu0 0.0
    %189 = vmatprep.subr.mxu0 0.0
    %190 = vmatpush1.msra.mxu0 0.0
    %191 = vmatprep.subr.mxu0 0.0
    %192 = vmatpush1.msra.mxu0 0.0
    %193 = vmatprep.subr.mxu0 0.0
    %194 = vmatpush1.msra.mxu0 0.0
    %195 = vmatprep.subr.mxu0 0.0
    %196 = vmatpush1.msra.mxu0 0.0
    %197 = vmatprep.subr.mxu0 0.0
    %198 = vmatpush1.msra.mxu0 0.0
    %199 = vmatprep.subr.mxu0 0.0
    %200 = vmatpush1.msra.mxu0 0.0
    %201 = vmatprep.subr.mxu0 0.0
    %202 = vmatpush1.msra.mxu0 0.0
    %203 = vmatprep.subr.mxu0 0.0
    %204 = vmatpush1.msra.mxu0 0.0
    %205 = vmatprep.mubr.f32.mxu0 0.0
    %206 = vmatmul.mubr.f32.gmra.mrb[0].mxu0 %v135
    %v207 = vpop.f32.mrb[0].mxu0
    %v208 = vadd.f32 %v132, %v207
    %v209 = vpop.f32.mrb[0].mxu0
    %210 = vdwg.mxu0
    %v211 = vxor.u32 %v208, 2147483648
    %v212 = vmul.f32 %v211, 1.442695
    %v213 = vpow.pop %v212
    %v214 = vadd.f32 %v213, 1.0
    %v215 = vrcp.pop %v214
    %v216 = vmul.f32 1.0, %v215
    %v217 = vlaneseq
    %v218 = vshrl.u32 %v217, 7
    %v219 = vsub.s32 0, %v218
    %v220 = vrot.slane %v44, %v219
    %vm221 = vcmask 31744
    %v223 = vsel %vm221, %v216, 0
    %vm225 = vcmask 1043456
    %v227 = vsel %vm225, %v43, 0
    %229 = vmatprep.subr.mxu0 0.0
    %230 = vmatpush1.msra.mxu0 %v227
    %231 = vmatprep.subr.mxu0 0.0
    %232 = vmatpush1.msra.mxu0 0.0
    %233 = vmatprep.subr.mxu0 0.0
    %234 = vmatpush1.msra.mxu0 0.0
    %235 = vmatprep.subr.mxu0 0.0
    %236 = vmatpush1.msra.mxu0 0.0
    %237 = vmatprep.subr.mxu0 0.0
    %238 = vmatpush1.msra.mxu0 0.0
    %239 = vmatprep.subr.mxu0 0.0
    %240 = vmatpush1.msra.mxu0 0.0
    %241 = vmatprep.subr.mxu0 0.0
    %242 = vmatpush1.msra.mxu0 0.0
    %243 = vmatprep.subr.mxu0 0.0
    %244 = vmatpush1.msra.mxu0 0.0
    %245 = vmatprep.subr.mxu0 0.0
    %246 = vmatpush1.msra.mxu0 0.0
    %247 = vmatprep.subr.mxu0 0.0
    %248 = vmatpush1.msra.mxu0 0.0
    %249 = vmatprep.subr.mxu0 0.0
    %250 = vmatpush1.msra.mxu0 0.0
    %251 = vmatprep.subr.mxu0 0.0
    %252 = vmatpush1.msra.mxu0 0.0
    %253 = vmatprep.subr.mxu0 0.0
    %254 = vmatpush1.msra.mxu0 0.0
    %255 = vmatprep.subr.mxu0 0.0
    %256 = vmatpush1.msra.mxu0 0.0
    %257 = vmatprep.subr.mxu0 0.0
    %258 = vmatpush1.msra.mxu0 0.0
    %259 = vmatprep.subr.mxu0 0.0
    %260 = vmatpush1.msra.mxu0 0.0
    %261 = vmatprep.subr.mxu0 0.0
    %262 = vmatpush1.msra.mxu0 0.0
    %263 = vmatprep.subr.mxu0 0.0
    %264 = vmatpush1.msra.mxu0 0.0
    %265 = vmatprep.subr.mxu0 0.0
    %266 = vmatpush1.msra.mxu0 0.0
    %267 = vmatprep.subr.mxu0 0.0
    %268 = vmatpush1.msra.mxu0 0.0
    %269 = vmatprep.subr.mxu0 0.0
    %270 = vmatpush1.msra.mxu0 0.0
    %271 = vmatprep.subr.mxu0 0.0
    %272 = vmatpush1.msra.mxu0 0.0
    %273 = vmatprep.subr.mxu0 0.0
    %274 = vmatpush1.msra.mxu0 0.0
    %275 = vmatprep.subr.mxu0 0.0
    %276 = vmatpush1.msra.mxu0 0.0
    %277 = vmatprep.subr.mxu0 0.0
    %278 = vmatpush1.msra.mxu0 0.0
    %279 = vmatprep.subr.mxu0 0.0
    %280 = vmatpush1.msra.mxu0 0.0
    %281 = vmatprep.subr.mxu0 0.0
    %282 = vmatpush1.msra.mxu0 0.0
    %283 = vmatprep.subr.mxu0 0.0
    %284 = vmatpush1.msra.mxu0 0.0
    %285 = vmatprep.subr.mxu0 0.0
    %286 = vmatpush1.msra.mxu0 0.0
    %287 = vmatprep.subr.mxu0 0.0
    %288 = vmatpush1.msra.mxu0 0.0
    %289 = vmatprep.subr.mxu0 0.0
    %290 = vmatpush1.msra.mxu0 0.0
    %291 = vmatprep.subr.mxu0 0.0
    %292 = vmatpush1.msra.mxu0 0.0
    %293 = vmatprep.mubr.f32.mxu0 0.0
    %294 = vmatmul.mubr.f32.gmra.mrb[0].mxu0 %v223
    %v295 = vpop.f32.mrb[0].mxu0
    %v296 = vadd.f32 %v220, %v295
    %v297 = vpop.f32.mrb[0].mxu0
    %298 = vdwg.mxu0
    %v299 = vxor.u32 %v296, 2147483648
    %v300 = vmul.f32 %v299, 1.442695
    %v301 = vpow.pop %v300
    %v302 = vadd.f32 %v301, 1.0
    %v303 = vrcp.pop %v302
    %v304 = vmul.f32 1.0, %v303
    %305 = vst [vmem:[#allocation7] sm:$0xff] %v304
    // Predicated region
    $region18: #{tpu_custom_call.1} parent=1 // pred_check
      _
    $region19: #{tpu_custom_call.1} parent=1 // pred_check_branch
      %307 = sbr.rel (0) target = $region21
    $region20: #{tpu_custom_call.1} parent=1 // pred_region
      %s309 = ssub.s32 128, 128
      %310 = vsyncadd [#allocation4], %s309
      %s312 = sshll.u32 [#allocation7], 4
      %s313 = int_to_ptr.vmem [resolvable:$true] %s312
      %315 = dma.vmem_to_hbm [thread:$0]  %s313, 128, %s2, [#allocation4]
    $region21: #{tpu_custom_call.1} parent=1 // pred_fallthru
      _
    // Predicated region
    $region22: #{tpu_custom_call.1} parent=1 // pred_check
      _
    $region23: #{tpu_custom_call.1} parent=1 // pred_check_branch
      %317 = sbr.rel (0) target = $region25
    $region24: #{tpu_custom_call.1} parent=1 // pred_region
      %318 = dma.done [#allocation4], 128
    $region25: #{tpu_custom_call.1} parent=1 // pred_fallthru
      _
    %319 = vsyncpa [#allocation3], 1
    %320 = vsyncpa [#allocation6], 1
    %321 = vsyncpa [#allocation4], 1

</llo_original>
